<compile_context>
chip_gen: v7x
topology: tpu7x:2x2x1
jax: 0.10.0
libtpu: 0.0.40
codegen_flags: <defaults>
</compile_context>

<pallas_src>
import functools

import numpy as np
import jax
import jax.numpy as jnp
from jax import lax
from jax.experimental import pallas as pl
from jax.experimental.pallas import tpu as pltpu

LAMBDA = 0.003
TOPK = 20
_IBIG = np.int32(np.iinfo(np.int32).max)


def _round_up(v, m):
    return ((v + m - 1) // m) * m


def _dlpcnn_kernel(preds_ref, ycol_ref, xf_ref, yrow_ref, sqrow_ref, out_ref,
                   *, k, lam, b_actual):
    i = pl.program_id(0)
    TB, C = preds_ref.shape
    Bp, D = xf_ref.shape

    preds = preds_ref[...]                       # (TB, C) f32  (row block)
    yb = ycol_ref[...]                           # (TB, 1) i32  (row block labels)
    xf = xf_ref[...]                             # (Bp, D) f32  (resident)
    yf = yrow_ref[...]                           # (1, Bp) i32  (resident)
    sq_j = sqrow_ref[...]                        # (1, Bp) f32  (resident ||x_j||^2)

    start = pl.multiple_of(i * TB, TB)
    xb = xf_ref[pl.ds(start, TB), :]             # (TB, D) row block of x (VMEM slice)

    # ---- pairwise squared distances for this row block (MXU Gram) ----
    G = lax.dot_general(xb, xf, (((1,), (1,)), ((), ())),
                        preferred_element_type=jnp.float32)        # (TB, Bp)
    sq_i = jnp.sum(xb * xb, axis=1, keepdims=True)                 # (TB, 1)
    dist = jnp.maximum(sq_i + sq_j - 2.0 * G, 0.0)                 # >= 0

    # ---- validity: same class, not self (padded columns carry label -1) ----
    col_ids = lax.broadcasted_iota(jnp.int32, (TB, Bp), 1)
    row_g = lax.broadcasted_iota(jnp.int32, (TB, Bp), 0) + i * TB
    valid = jnp.logical_and(yb == yf, col_ids != row_g)

    # ---- monotone int32 key, column index packed into the low bits ----
    # dist >= 0 so the f32 -> i32 bitcast is order preserving; packing col_ids
    # into the low bits makes every valid key in a row unique (free tie-break,
    # lowest index first == heapq.nsmallest stability).
    nbits = max(1, (Bp - 1).bit_length())        # static
    hi_mask = jnp.int32(~((1 << nbits) - 1))
    dbits = pltpu.bitcast(dist, jnp.int32)
    ikey = jnp.where(valid, (dbits & hi_mask) | col_ids, _IBIG)

    # ---- top-k: k passes, each removes the (unique) row minimum ----
    # Exhausted rows are a no-op (min == IBIG -> rewriting IBIG with IBIG).
    def body(_, ik):
        cur = jnp.min(ik, axis=1, keepdims=True)                   # (TB, 1) XLU
        return jnp.where(ik == cur, _IBIG, ik)

    unroll = True if TB * Bp <= 64 * 1024 else 4
    ik_final = lax.fori_loop(0, k, body, ikey, unroll=unroll)
    # selection matrix = initially-valid entries that got removed
    sel = jnp.where(jnp.logical_and(ik_final == _IBIG, ikey != _IBIG), 1.0, 0.0)

    # ---- centers (MXU) and local-preserving term ----
    centers = jnp.dot(sel, xf, preferred_element_type=jnp.float32) * (1.0 / k)
    diff = xb - centers
    lp_rows = jnp.sum(diff * diff, axis=1, keepdims=True)          # (TB, 1)

    # ---- cross entropy (mean, no class weights); picked logit via class iota ----
    cls_ids = lax.broadcasted_iota(jnp.int32, (TB, C), 1)
    picked = jnp.sum(jnp.where(cls_ids == yb, preds, 0.0), axis=1, keepdims=True)
    m = jnp.max(preds, axis=1, keepdims=True)
    lse = m + jnp.log(jnp.sum(jnp.exp(preds - m), axis=1, keepdims=True))

    # ---- per-row total, masked for padded rows, scaled by 1/B ----
    rvalid = (lax.broadcasted_iota(jnp.int32, (TB, 1), 0) + i * TB) < b_actual
    per_row = jnp.where(rvalid, (lam * 0.5) * lp_rows + (lse - picked), 0.0)
    partial = jnp.sum(per_row) * jnp.float32(1.0 / b_actual)

    # write the per-block partial into element [0,0] of a lane-aligned (8,128) tile
    r8 = lax.broadcasted_iota(jnp.int32, (8, 128), 0)
    c128 = lax.broadcasted_iota(jnp.int32, (8, 128), 1)
    out_ref[...] = jnp.where(jnp.logical_and(r8 == 0, c128 == 0), partial, 0.0)


@functools.partial(jax.jit, static_argnames=("k", "lam"))
def dlpcnn_loss(preds, x, y, k=TOPK, lam=LAMBDA):
    preds = preds.astype(jnp.float32)
    x = x.astype(jnp.float32)
    y = y.astype(jnp.int32)
    B, D = x.shape
    C = preds.shape[1]

    # row-block tiling (pad batch so the block divides it; padded labels = -1)
    TB = min(256, _round_up(B, 8))
    B_pad = _round_up(B, TB)
    nb = B_pad // TB
    pad = B_pad - B
    if pad:
        preds = jnp.pad(preds, ((0, pad), (0, 0)))
        x = jnp.pad(x, ((0, pad), (0, 0)))
        y = jnp.pad(y, (0, pad), constant_values=-1)

    y_col = y.reshape(B_pad, 1)
    y_row = y.reshape(1, B_pad)
    sq_row = jnp.sum(x * x, axis=1).reshape(1, B_pad)   # ||x_j||^2, resident in VMEM

    # explicit scoped-VMEM budget: resident x (double-buffered) + per-block slabs
    est_vmem = (2 * B_pad * D * 4            # resident x
                + 8 * TB * B_pad * 4         # ikey / sel / dist / mask slabs
                + 4 * TB * (C + D + 8) * 4   # preds block, centers, diff
                + 8 * B_pad * 4              # y row / sq row
                + (2 << 20))                 # headroom
    vmem_limit = int(min(max(est_vmem, 16 << 20), 48 << 20))

    out = pl.pallas_call(
        functools.partial(_dlpcnn_kernel, k=k, lam=lam, b_actual=B),
        out_shape=jax.ShapeDtypeStruct((8 * nb, 128), jnp.float32),
        grid=(nb,),
        in_specs=[
            pl.BlockSpec((TB, C), lambda i: (i, 0)),       # preds row block
            pl.BlockSpec((TB, 1), lambda i: (i, 0)),       # y column block
            pl.BlockSpec((B_pad, D), lambda i: (0, 0)),    # x, fully resident
            pl.BlockSpec((1, B_pad), lambda i: (0, 0)),    # y row, resident
            pl.BlockSpec((1, B_pad), lambda i: (0, 0)),    # ||x_j||^2, resident
        ],
        out_specs=pl.BlockSpec((8, 128), lambda i: (i, 0)),
        compiler_params=pltpu.CompilerParams(
            dimension_semantics=("parallel",),
            vmem_limit_bytes=vmem_limit),
    )(preds, y_col, x, y_row, sq_row)
    return jnp.sum(out)


def ref_dlpcnn_loss(preds, x, y, k=TOPK, lam=LAMBDA):
    """Pure-numpy reference mirroring the PyTorch module semantics."""
    preds = np.asarray(preds, np.float32)
    x = np.asarray(x, np.float32)
    y = np.asarray(y)
    B, D = x.shape
    loss_lp = 0.0
    for i in range(B):
        ds = []
        for j in range(B):
            if j != i and y[j] == y[i]:
                ds.append((float(np.sum((x[j] - x[i]) ** 2)), j))
        ds.sort(key=lambda t: t[0])
        chosen = ds[:k]
        center = np.zeros((D,), np.float32)
        for _, j in chosen:
            center = center + x[j]
        center = center / float(k)        # divide by k even if fewer neighbours
        loss_lp += float(np.sum((x[i] - center) ** 2))
    loss_lp /= B
    m = preds.max(axis=1, keepdims=True)
    lse = m[:, 0] + np.log(np.sum(np.exp(preds - m), axis=1))
    ce = float(np.mean(lse - preds[np.arange(B), y]))
    return lam * loss_lp / 2.0 + ce


if __name__ == "__main__":
    key = jax.random.PRNGKey(0)
    B, C, D = 8, 4, 128
    k1, k2, k3, k4 = jax.random.split(key, 4)
    preds = jax.random.normal(k1, (B, C), jnp.float32)
    x = jax.random.normal(k2, (B, D), jnp.float32)
    y = jax.random.randint(k3, (B,), 0, C, jnp.int32)

    # main run with module defaults (k=20, lamda=0.003)
    out = jax.block_until_ready(dlpcnn_loss(preds, x, y))
    ref = ref_dlpcnn_loss(np.array(preds), np.array(x), np.array(y))
    assert np.isfinite(float(out))
    np.testing.assert_allclose(float(out), ref, rtol=2e-3, atol=2e-3)

    # extra check exercising the top-k trimming path (k smaller than class sizes)
    y2 = jax.random.randint(k4, (B,), 0, 2, jnp.int32)
    out2 = jax.block_until_ready(dlpcnn_loss(preds, x, y2, k=2))
    ref2 = ref_dlpcnn_loss(np.array(preds), np.array(x), np.array(y2), k=2)
    np.testing.assert_allclose(float(out2), ref2, rtol=2e-3, atol=2e-3)

    print("KERNEL_OK")
</pallas_src>

<mosaic_0001>
module attributes {stable_mosaic.version = 11 : i64} {
  func.func @_dlpcnn_kernel(%arg0: i32, %arg1: memref<8x4xf32, #tpu.memory_space<vmem>>, %arg2: memref<8x1xi32, #tpu.memory_space<vmem>>, %arg3: memref<8x128xf32, #tpu.memory_space<vmem>>, %arg4: memref<1x8xi32, #tpu.memory_space<vmem>>, %arg5: memref<1x8xf32, #tpu.memory_space<vmem>>, %arg6: memref<8x128xf32, #tpu.memory_space<vmem>>) attributes {dimension_semantics = [#tpu.dimension_semantics<parallel>], iteration_bounds = array<i64: 1>, scalar_prefetch = 0 : i64, scratch_operands = 0 : i64, tpu.core_type = #tpu.core_type<tc>, window_params = [{transform_indices = @transform_0, window_bounds = array<i64: 8, 4>}, {transform_indices = @transform_1, window_bounds = array<i64: 8, 1>}, {pipeline_mode = #tpu.pipeline_mode<synchronous>, transform_indices = @transform_2, window_bounds = array<i64: 8, 128>}, {pipeline_mode = #tpu.pipeline_mode<synchronous>, transform_indices = @transform_3, window_bounds = array<i64: 1, 8>}, {pipeline_mode = #tpu.pipeline_mode<synchronous>, transform_indices = @transform_4, window_bounds = array<i64: 1, 8>}, {transform_indices = @transform_5, window_bounds = array<i64: 8, 128>}]} {
    %c0 = arith.constant 0 : index
    %c0_0 = arith.constant 0 : index
    %0 = vector.load %arg1[%c0, %c0_0] : memref<8x4xf32, #tpu.memory_space<vmem>>, vector<8x4xf32>
    %c0_1 = arith.constant 0 : index
    %c0_2 = arith.constant 0 : index
    %1 = vector.load %arg2[%c0_1, %c0_2] : memref<8x1xi32, #tpu.memory_space<vmem>>, vector<8x1xi32>
    %c0_3 = arith.constant 0 : index
    %c0_4 = arith.constant 0 : index
    %2 = vector.load %arg3[%c0_3, %c0_4] : memref<8x128xf32, #tpu.memory_space<vmem>>, vector<8x128xf32>
    %c0_5 = arith.constant 0 : index
    %c0_6 = arith.constant 0 : index
    %3 = vector.load %arg4[%c0_5, %c0_6] : memref<1x8xi32, #tpu.memory_space<vmem>>, vector<1x8xi32>
    %c0_7 = arith.constant 0 : index
    %c0_8 = arith.constant 0 : index
    %4 = vector.load %arg5[%c0_7, %c0_8] : memref<1x8xf32, #tpu.memory_space<vmem>>, vector<1x8xf32>
    %c8_i32 = arith.constant 8 : i32
    %5 = arith.muli %arg0, %c8_i32 : i32
    %6 = tpu.assume_multiple %5, 8 : i32
    %7 = arith.index_cast %6 : i32 to index
    %c0_9 = arith.constant 0 : index
    %8 = vector.load %arg3[%7, %c0_9] : memref<8x128xf32, #tpu.memory_space<vmem>>, vector<8x128xf32>
    %cst = arith.constant dense<0.000000e+00> : vector<8x8xf32>
    %9 = tpu.matmul %8, %2, %cst {dimension_numbers = #tpu.dot_dimension_numbers<[1], [1], [0], [0], [0, 0, 1, 0], [], []>} : vector<8x128xf32>, vector<8x128xf32>, vector<8x8xf32> -> vector<8x8xf32>
    %10 = arith.mulf %8, %8 : vector<8x128xf32>
    %cst_10 = arith.constant dense<0.000000e+00> : vector<8xf32>
    %11 = vector.multi_reduction <add>, %10, %cst_10 [1] : vector<8x128xf32> to vector<8xf32>
    %12 = vector.shape_cast %11 : vector<8xf32> to vector<8x1xf32>
    %13 = vector.broadcast %12 : vector<8x1xf32> to vector<8x8xf32>
    %14 = vector.broadcast %4 : vector<1x8xf32> to vector<8x8xf32>
    %15 = arith.addf %13, %14 : vector<8x8xf32>
    %cst_11 = arith.constant 2.000000e+00 : f32
    %16 = vector.broadcast %cst_11 : f32 to vector<8x8xf32>
    %17 = arith.mulf %16, %9 : vector<8x8xf32>
    %18 = arith.subf %15, %17 : vector<8x8xf32>
    %cst_12 = arith.constant 0.000000e+00 : f32
    %19 = vector.broadcast %cst_12 : f32 to vector<8x8xf32>
    %20 = arith.maximumf %18, %19 : vector<8x8xf32>
    %21 = tpu.iota {dimensions = array<i32: 1>} : vector<8x8xi32>
    %22 = tpu.iota {dimensions = array<i32: 0>} : vector<8x8xi32>
    %c8_i32_13 = arith.constant 8 : i32
    %23 = arith.muli %arg0, %c8_i32_13 : i32
    %24 = vector.broadcast %23 : i32 to vector<8x8xi32>
    %25 = arith.addi %22, %24 : vector<8x8xi32>
    %26 = vector.broadcast %1 : vector<8x1xi32> to vector<8x8xi32>
    %27 = vector.broadcast %3 : vector<1x8xi32> to vector<8x8xi32>
    %28 = arith.cmpi eq, %26, %27 : vector<8x8xi32>
    %29 = arith.cmpi ne, %21, %25 : vector<8x8xi32>
    %30 = arith.andi %28, %29 : vector<8x8xi1>
    %31 = tpu.bitcast %20 : vector<8x8xf32> -> vector<8x8xi32>
    %c-8_i32 = arith.constant -8 : i32
    %32 = vector.broadcast %c-8_i32 : i32 to vector<8x8xi32>
    %33 = arith.andi %31, %32 : vector<8x8xi32>
    %34 = arith.ori %33, %21 : vector<8x8xi32>
    %c2147483647_i32 = arith.constant 2147483647 : i32
    %35 = vector.broadcast %c2147483647_i32 : i32 to vector<8x8xi32>
    %36 = arith.select %30, %34, %35 : vector<8x8xi1>, vector<8x8xi32>
    %c0_i32 = arith.constant 0 : i32
    %cst_14 = arith.constant dense<2147483647> : vector<8xi32>
    %37 = vector.multi_reduction <minsi>, %36, %cst_14 [1] : vector<8x8xi32> to vector<8xi32>
    %38 = vector.shape_cast %37 : vector<8xi32> to vector<8x1xi32>
    %39 = vector.broadcast %38 : vector<8x1xi32> to vector<8x8xi32>
    %40 = arith.cmpi eq, %36, %39 : vector<8x8xi32>
    %c2147483647_i32_15 = arith.constant 2147483647 : i32
    %41 = vector.broadcast %c2147483647_i32_15 : i32 to vector<8x8xi32>
    %42 = arith.select %40, %41, %36 : vector<8x8xi1>, vector<8x8xi32>
    %c1_i32 = arith.constant 1 : i32
    %cst_16 = arith.constant dense<2147483647> : vector<8xi32>
    %43 = vector.multi_reduction <minsi>, %42, %cst_16 [1] : vector<8x8xi32> to vector<8xi32>
    %44 = vector.shape_cast %43 : vector<8xi32> to vector<8x1xi32>
    %45 = vector.broadcast %44 : vector<8x1xi32> to vector<8x8xi32>
    %46 = arith.cmpi eq, %42, %45 : vector<8x8xi32>
    %c2147483647_i32_17 = arith.constant 2147483647 : i32
    %47 = vector.broadcast %c2147483647_i32_17 : i32 to vector<8x8xi32>
    %48 = arith.select %46, %47, %42 : vector<8x8xi1>, vector<8x8xi32>
    %c2_i32 = arith.constant 2 : i32
    %cst_18 = arith.constant dense<2147483647> : vector<8xi32>
    %49 = vector.multi_reduction <minsi>, %48, %cst_18 [1] : vector<8x8xi32> to vector<8xi32>
    %50 = vector.shape_cast %49 : vector<8xi32> to vector<8x1xi32>
    %51 = vector.broadcast %50 : vector<8x1xi32> to vector<8x8xi32>
    %52 = arith.cmpi eq, %48, %51 : vector<8x8xi32>
    %c2147483647_i32_19 = arith.constant 2147483647 : i32
    %53 = vector.broadcast %c2147483647_i32_19 : i32 to vector<8x8xi32>
    %54 = arith.select %52, %53, %48 : vector<8x8xi1>, vector<8x8xi32>
    %c3_i32 = arith.constant 3 : i32
    %cst_20 = arith.constant dense<2147483647> : vector<8xi32>
    %55 = vector.multi_reduction <minsi>, %54, %cst_20 [1] : vector<8x8xi32> to vector<8xi32>
    %56 = vector.shape_cast %55 : vector<8xi32> to vector<8x1xi32>
    %57 = vector.broadcast %56 : vector<8x1xi32> to vector<8x8xi32>
    %58 = arith.cmpi eq, %54, %57 : vector<8x8xi32>
    %c2147483647_i32_21 = arith.constant 2147483647 : i32
    %59 = vector.broadcast %c2147483647_i32_21 : i32 to vector<8x8xi32>
    %60 = arith.select %58, %59, %54 : vector<8x8xi1>, vector<8x8xi32>
    %c4_i32 = arith.constant 4 : i32
    %cst_22 = arith.constant dense<2147483647> : vector<8xi32>
    %61 = vector.multi_reduction <minsi>, %60, %cst_22 [1] : vector<8x8xi32> to vector<8xi32>
    %62 = vector.shape_cast %61 : vector<8xi32> to vector<8x1xi32>
    %63 = vector.broadcast %62 : vector<8x1xi32> to vector<8x8xi32>
    %64 = arith.cmpi eq, %60, %63 : vector<8x8xi32>
    %c2147483647_i32_23 = arith.constant 2147483647 : i32
    %65 = vector.broadcast %c2147483647_i32_23 : i32 to vector<8x8xi32>
    %66 = arith.select %64, %65, %60 : vector<8x8xi1>, vector<8x8xi32>
    %c5_i32 = arith.constant 5 : i32
    %cst_24 = arith.constant dense<2147483647> : vector<8xi32>
    %67 = vector.multi_reduction <minsi>, %66, %cst_24 [1] : vector<8x8xi32> to vector<8xi32>
    %68 = vector.shape_cast %67 : vector<8xi32> to vector<8x1xi32>
    %69 = vector.broadcast %68 : vector<8x1xi32> to vector<8x8xi32>
    %70 = arith.cmpi eq, %66, %69 : vector<8x8xi32>
    %c2147483647_i32_25 = arith.constant 2147483647 : i32
    %71 = vector.broadcast %c2147483647_i32_25 : i32 to vector<8x8xi32>
    %72 = arith.select %70, %71, %66 : vector<8x8xi1>, vector<8x8xi32>
    %c6_i32 = arith.constant 6 : i32
    %cst_26 = arith.constant dense<2147483647> : vector<8xi32>
    %73 = vector.multi_reduction <minsi>, %72, %cst_26 [1] : vector<8x8xi32> to vector<8xi32>
    %74 = vector.shape_cast %73 : vector<8xi32> to vector<8x1xi32>
    %75 = vector.broadcast %74 : vector<8x1xi32> to vector<8x8xi32>
    %76 = arith.cmpi eq, %72, %75 : vector<8x8xi32>
    %c2147483647_i32_27 = arith.constant 2147483647 : i32
    %77 = vector.broadcast %c2147483647_i32_27 : i32 to vector<8x8xi32>
    %78 = arith.select %76, %77, %72 : vector<8x8xi1>, vector<8x8xi32>
    %c7_i32 = arith.constant 7 : i32
    %cst_28 = arith.constant dense<2147483647> : vector<8xi32>
    %79 = vector.multi_reduction <minsi>, %78, %cst_28 [1] : vector<8x8xi32> to vector<8xi32>
    %80 = vector.shape_cast %79 : vector<8xi32> to vector<8x1xi32>
    %81 = vector.broadcast %80 : vector<8x1xi32> to vector<8x8xi32>
    %82 = arith.cmpi eq, %78, %81 : vector<8x8xi32>
    %c2147483647_i32_29 = arith.constant 2147483647 : i32
    %83 = vector.broadcast %c2147483647_i32_29 : i32 to vector<8x8xi32>
    %84 = arith.select %82, %83, %78 : vector<8x8xi1>, vector<8x8xi32>
    %c8_i32_30 = arith.constant 8 : i32
    %cst_31 = arith.constant dense<2147483647> : vector<8xi32>
    %85 = vector.multi_reduction <minsi>, %84, %cst_31 [1] : vector<8x8xi32> to vector<8xi32>
    %86 = vector.shape_cast %85 : vector<8xi32> to vector<8x1xi32>
    %87 = vector.broadcast %86 : vector<8x1xi32> to vector<8x8xi32>
    %88 = arith.cmpi eq, %84, %87 : vector<8x8xi32>
    %c2147483647_i32_32 = arith.constant 2147483647 : i32
    %89 = vector.broadcast %c2147483647_i32_32 : i32 to vector<8x8xi32>
    %90 = arith.select %88, %89, %84 : vector<8x8xi1>, vector<8x8xi32>
    %c9_i32 = arith.constant 9 : i32
    %cst_33 = arith.constant dense<2147483647> : vector<8xi32>
    %91 = vector.multi_reduction <minsi>, %90, %cst_33 [1] : vector<8x8xi32> to vector<8xi32>
    %92 = vector.shape_cast %91 : vector<8xi32> to vector<8x1xi32>
    %93 = vector.broadcast %92 : vector<8x1xi32> to vector<8x8xi32>
    %94 = arith.cmpi eq, %90, %93 : vector<8x8xi32>
    %c2147483647_i32_34 = arith.constant 2147483647 : i32
    %95 = vector.broadcast %c2147483647_i32_34 : i32 to vector<8x8xi32>
    %96 = arith.select %94, %95, %90 : vector<8x8xi1>, vector<8x8xi32>
    %c10_i32 = arith.constant 10 : i32
    %cst_35 = arith.constant dense<2147483647> : vector<8xi32>
    %97 = vector.multi_reduction <minsi>, %96, %cst_35 [1] : vector<8x8xi32> to vector<8xi32>
    %98 = vector.shape_cast %97 : vector<8xi32> to vector<8x1xi32>
    %99 = vector.broadcast %98 : vector<8x1xi32> to vector<8x8xi32>
    %100 = arith.cmpi eq, %96, %99 : vector<8x8xi32>
    %c2147483647_i32_36 = arith.constant 2147483647 : i32
    %101 = vector.broadcast %c2147483647_i32_36 : i32 to vector<8x8xi32>
    %102 = arith.select %100, %101, %96 : vector<8x8xi1>, vector<8x8xi32>
    %c11_i32 = arith.constant 11 : i32
    %cst_37 = arith.constant dense<2147483647> : vector<8xi32>
    %103 = vector.multi_reduction <minsi>, %102, %cst_37 [1] : vector<8x8xi32> to vector<8xi32>
    %104 = vector.shape_cast %103 : vector<8xi32> to vector<8x1xi32>
    %105 = vector.broadcast %104 : vector<8x1xi32> to vector<8x8xi32>
    %106 = arith.cmpi eq, %102, %105 : vector<8x8xi32>
    %c2147483647_i32_38 = arith.constant 2147483647 : i32
    %107 = vector.broadcast %c2147483647_i32_38 : i32 to vector<8x8xi32>
    %108 = arith.select %106, %107, %102 : vector<8x8xi1>, vector<8x8xi32>
    %c12_i32 = arith.constant 12 : i32
    %cst_39 = arith.constant dense<2147483647> : vector<8xi32>
    %109 = vector.multi_reduction <minsi>, %108, %cst_39 [1] : vector<8x8xi32> to vector<8xi32>
    %110 = vector.shape_cast %109 : vector<8xi32> to vector<8x1xi32>
    %111 = vector.broadcast %110 : vector<8x1xi32> to vector<8x8xi32>
    %112 = arith.cmpi eq, %108, %111 : vector<8x8xi32>
    %c2147483647_i32_40 = arith.constant 2147483647 : i32
    %113 = vector.broadcast %c2147483647_i32_40 : i32 to vector<8x8xi32>
    %114 = arith.select %112, %113, %108 : vector<8x8xi1>, vector<8x8xi32>
    %c13_i32 = arith.constant 13 : i32
    %cst_41 = arith.constant dense<2147483647> : vector<8xi32>
    %115 = vector.multi_reduction <minsi>, %114, %cst_41 [1] : vector<8x8xi32> to vector<8xi32>
    %116 = vector.shape_cast %115 : vector<8xi32> to vector<8x1xi32>
    %117 = vector.broadcast %116 : vector<8x1xi32> to vector<8x8xi32>
    %118 = arith.cmpi eq, %114, %117 : vector<8x8xi32>
    %c2147483647_i32_42 = arith.constant 2147483647 : i32
    %119 = vector.broadcast %c2147483647_i32_42 : i32 to vector<8x8xi32>
    %120 = arith.select %118, %119, %114 : vector<8x8xi1>, vector<8x8xi32>
    %c14_i32 = arith.constant 14 : i32
    %cst_43 = arith.constant dense<2147483647> : vector<8xi32>
    %121 = vector.multi_reduction <minsi>, %120, %cst_43 [1] : vector<8x8xi32> to vector<8xi32>
    %122 = vector.shape_cast %121 : vector<8xi32> to vector<8x1xi32>
    %123 = vector.broadcast %122 : vector<8x1xi32> to vector<8x8xi32>
    %124 = arith.cmpi eq, %120, %123 : vector<8x8xi32>
    %c2147483647_i32_44 = arith.constant 2147483647 : i32
    %125 = vector.broadcast %c2147483647_i32_44 : i32 to vector<8x8xi32>
    %126 = arith.select %124, %125, %120 : vector<8x8xi1>, vector<8x8xi32>
    %c15_i32 = arith.constant 15 : i32
    %cst_45 = arith.constant dense<2147483647> : vector<8xi32>
    %127 = vector.multi_reduction <minsi>, %126, %cst_45 [1] : vector<8x8xi32> to vector<8xi32>
    %128 = vector.shape_cast %127 : vector<8xi32> to vector<8x1xi32>
    %129 = vector.broadcast %128 : vector<8x1xi32> to vector<8x8xi32>
    %130 = arith.cmpi eq, %126, %129 : vector<8x8xi32>
    %c2147483647_i32_46 = arith.constant 2147483647 : i32
    %131 = vector.broadcast %c2147483647_i32_46 : i32 to vector<8x8xi32>
    %132 = arith.select %130, %131, %126 : vector<8x8xi1>, vector<8x8xi32>
    %c16_i32 = arith.constant 16 : i32
    %cst_47 = arith.constant dense<2147483647> : vector<8xi32>
    %133 = vector.multi_reduction <minsi>, %132, %cst_47 [1] : vector<8x8xi32> to vector<8xi32>
    %134 = vector.shape_cast %133 : vector<8xi32> to vector<8x1xi32>
    %135 = vector.broadcast %134 : vector<8x1xi32> to vector<8x8xi32>
    %136 = arith.cmpi eq, %132, %135 : vector<8x8xi32>
    %c2147483647_i32_48 = arith.constant 2147483647 : i32
    %137 = vector.broadcast %c2147483647_i32_48 : i32 to vector<8x8xi32>
    %138 = arith.select %136, %137, %132 : vector<8x8xi1>, vector<8x8xi32>
    %c17_i32 = arith.constant 17 : i32
    %cst_49 = arith.constant dense<2147483647> : vector<8xi32>
    %139 = vector.multi_reduction <minsi>, %138, %cst_49 [1] : vector<8x8xi32> to vector<8xi32>
    %140 = vector.shape_cast %139 : vector<8xi32> to vector<8x1xi32>
    %141 = vector.broadcast %140 : vector<8x1xi32> to vector<8x8xi32>
    %142 = arith.cmpi eq, %138, %141 : vector<8x8xi32>
    %c2147483647_i32_50 = arith.constant 2147483647 : i32
    %143 = vector.broadcast %c2147483647_i32_50 : i32 to vector<8x8xi32>
    %144 = arith.select %142, %143, %138 : vector<8x8xi1>, vector<8x8xi32>
    %c18_i32 = arith.constant 18 : i32
    %cst_51 = arith.constant dense<2147483647> : vector<8xi32>
    %145 = vector.multi_reduction <minsi>, %144, %cst_51 [1] : vector<8x8xi32> to vector<8xi32>
    %146 = vector.shape_cast %145 : vector<8xi32> to vector<8x1xi32>
    %147 = vector.broadcast %146 : vector<8x1xi32> to vector<8x8xi32>
    %148 = arith.cmpi eq, %144, %147 : vector<8x8xi32>
    %c2147483647_i32_52 = arith.constant 2147483647 : i32
    %149 = vector.broadcast %c2147483647_i32_52 : i32 to vector<8x8xi32>
    %150 = arith.select %148, %149, %144 : vector<8x8xi1>, vector<8x8xi32>
    %c19_i32 = arith.constant 19 : i32
    %cst_53 = arith.constant dense<2147483647> : vector<8xi32>
    %151 = vector.multi_reduction <minsi>, %150, %cst_53 [1] : vector<8x8xi32> to vector<8xi32>
    %152 = vector.shape_cast %151 : vector<8xi32> to vector<8x1xi32>
    %153 = vector.broadcast %152 : vector<8x1xi32> to vector<8x8xi32>
    %154 = arith.cmpi eq, %150, %153 : vector<8x8xi32>
    %c2147483647_i32_54 = arith.constant 2147483647 : i32
    %155 = vector.broadcast %c2147483647_i32_54 : i32 to vector<8x8xi32>
    %156 = arith.select %154, %155, %150 : vector<8x8xi1>, vector<8x8xi32>
    %c2147483647_i32_55 = arith.constant 2147483647 : i32
    %157 = vector.broadcast %c2147483647_i32_55 : i32 to vector<8x8xi32>
    %158 = arith.cmpi eq, %156, %157 : vector<8x8xi32>
    %c2147483647_i32_56 = arith.constant 2147483647 : i32
    %159 = vector.broadcast %c2147483647_i32_56 : i32 to vector<8x8xi32>
    %160 = arith.cmpi ne, %36, %159 : vector<8x8xi32>
    %161 = arith.andi %158, %160 : vector<8x8xi1>
    %cst_57 = arith.constant 1.000000e+00 : f32
    %cst_58 = arith.constant 0.000000e+00 : f32
    %162 = vector.broadcast %cst_57 : f32 to vector<8x8xf32>
    %163 = vector.broadcast %cst_58 : f32 to vector<8x8xf32>
    %164 = arith.select %161, %162, %163 : vector<8x8xi1>, vector<8x8xf32>
    %cst_59 = arith.constant dense<0.000000e+00> : vector<8x128xf32>
    %165 = tpu.matmul %164, %2, %cst_59 {dimension_numbers = #tpu.dot_dimension_numbers<[1], [0], [0], [1], [0, 0, 1, 1], [], []>} : vector<8x8xf32>, vector<8x128xf32>, vector<8x128xf32> -> vector<8x128xf32>
    %cst_60 = arith.constant 5.000000e-02 : f32
    %166 = vector.broadcast %cst_60 : f32 to vector<8x128xf32>
    %167 = arith.mulf %165, %166 : vector<8x128xf32>
    %168 = arith.subf %8, %167 : vector<8x128xf32>
    %169 = arith.mulf %168, %168 : vector<8x128xf32>
    %cst_61 = arith.constant dense<0.000000e+00> : vector<8xf32>
    %170 = vector.multi_reduction <add>, %169, %cst_61 [1] : vector<8x128xf32> to vector<8xf32>
    %171 = vector.shape_cast %170 : vector<8xf32> to vector<8x1xf32>
    %172 = tpu.iota {dimensions = array<i32: 1>} : vector<8x4xi32>
    %173 = vector.broadcast %1 : vector<8x1xi32> to vector<8x4xi32>
    %174 = arith.cmpi eq, %172, %173 : vector<8x4xi32>
    %cst_62 = arith.constant 0.000000e+00 : f32
    %175 = vector.broadcast %cst_62 : f32 to vector<8x4xf32>
    %176 = arith.select %174, %0, %175 : vector<8x4xi1>, vector<8x4xf32>
    %cst_63 = arith.constant dense<0.000000e+00> : vector<8xf32>
    %177 = vector.multi_reduction <add>, %176, %cst_63 [1] : vector<8x4xf32> to vector<8xf32>
    %178 = vector.shape_cast %177 : vector<8xf32> to vector<8x1xf32>
    %cst_64 = arith.constant dense<0xFF800000> : vector<8xf32>
    %179 = vector.multi_reduction <maximumf>, %0, %cst_64 [1] : vector<8x4xf32> to vector<8xf32>
    %180 = vector.shape_cast %179 : vector<8xf32> to vector<8x1xf32>
    %181 = vector.broadcast %180 : vector<8x1xf32> to vector<8x4xf32>
    %182 = arith.subf %0, %181 : vector<8x4xf32>
    %183 = math.exp %182 : vector<8x4xf32>
    %cst_65 = arith.constant dense<0.000000e+00> : vector<8xf32>
    %184 = vector.multi_reduction <add>, %183, %cst_65 [1] : vector<8x4xf32> to vector<8xf32>
    %185 = vector.shape_cast %184 : vector<8xf32> to vector<8x1xf32>
    %186 = math.log %185 : vector<8x1xf32>
    %187 = arith.addf %180, %186 : vector<8x1xf32>
    %188 = tpu.iota {dimensions = array<i32: 0>} : vector<8x1xi32>
    %c8_i32_66 = arith.constant 8 : i32
    %189 = arith.muli %arg0, %c8_i32_66 : i32
    %190 = vector.broadcast %189 : i32 to vector<8x1xi32>
    %191 = arith.addi %188, %190 : vector<8x1xi32>
    %c8_i32_67 = arith.constant 8 : i32
    %192 = vector.broadcast %c8_i32_67 : i32 to vector<8x1xi32>
    %193 = arith.cmpi slt, %191, %192 : vector<8x1xi32>
    %cst_68 = arith.constant 1.500000e-03 : f32
    %194 = vector.broadcast %cst_68 : f32 to vector<8x1xf32>
    %195 = arith.mulf %194, %171 : vector<8x1xf32>
    %196 = arith.subf %187, %178 : vector<8x1xf32>
    %197 = arith.addf %195, %196 : vector<8x1xf32>
    %cst_69 = arith.constant 0.000000e+00 : f32
    %198 = vector.broadcast %cst_69 : f32 to vector<8x1xf32>
    %199 = arith.select %193, %197, %198 : vector<8x1xi1>, vector<8x1xf32>
    %200 = vector.shape_cast %199 : vector<8x1xf32> to vector<1x8x1xf32>
    %cst_70 = arith.constant dense<0.000000e+00> : vector<1xf32>
    %201 = vector.multi_reduction <add>, %200, %cst_70 [1, 2] : vector<1x8x1xf32> to vector<1xf32>
    %202 = vector.shape_cast %201 : vector<1xf32> to vector<1x1x1xf32>
    %203 = vector.extract %202[0, 0, 0] : f32 from vector<1x1x1xf32>
    %cst_71 = arith.constant 1.250000e-01 : f32
    %204 = arith.mulf %203, %cst_71 : f32
    %205 = tpu.iota {dimensions = array<i32: 0>} : vector<8x128xi32>
    %206 = tpu.iota {dimensions = array<i32: 1>} : vector<8x128xi32>
    %c0_i32_72 = arith.constant 0 : i32
    %207 = vector.broadcast %c0_i32_72 : i32 to vector<8x128xi32>
    %208 = arith.cmpi eq, %205, %207 : vector<8x128xi32>
    %c0_i32_73 = arith.constant 0 : i32
    %209 = vector.broadcast %c0_i32_73 : i32 to vector<8x128xi32>
    %210 = arith.cmpi eq, %206, %209 : vector<8x128xi32>
    %211 = arith.andi %208, %210 : vector<8x128xi1>
    %cst_74 = arith.constant 0.000000e+00 : f32
    %212 = vector.broadcast %204 : f32 to vector<8x128xf32>
    %213 = vector.broadcast %cst_74 : f32 to vector<8x128xf32>
    %214 = arith.select %211, %212, %213 : vector<8x128xi1>, vector<8x128xf32>
    %c0_75 = arith.constant 0 : index
    %c0_76 = arith.constant 0 : index
    %215 = vector.load %arg6[%c0_75, %c0_76] : memref<8x128xf32, #tpu.memory_space<vmem>>, vector<8x128xf32>
    tpu.vector_store %arg6[%c0_75, %c0_76], %214 {strides = array<i32>} : memref<8x128xf32, #tpu.memory_space<vmem>>, vector<8x128xf32>,
    return
  }
  func.func @transform_0(%arg0: i32) -> (i32, i32) {
    %c0_i32 = arith.constant 0 : i32
    %c0_i32_0 = arith.constant 0 : i32
    return %arg0, %c0_i32 : i32, i32
  }
  func.func @transform_1(%arg0: i32) -> (i32, i32) {
    %c0_i32 = arith.constant 0 : i32
    %c0_i32_0 = arith.constant 0 : i32
    return %arg0, %c0_i32 : i32, i32
  }
  func.func @transform_2(%arg0: i32) -> (i32, i32) {
    %c0_i32 = arith.constant 0 : i32
    %c0_i32_0 = arith.constant 0 : i32
    %c0_i32_1 = arith.constant 0 : i32
    return %c0_i32, %c0_i32_0 : i32, i32
  }
  func.func @transform_3(%arg0: i32) -> (i32, i32) {
    %c0_i32 = arith.constant 0 : i32
    %c0_i32_0 = arith.constant 0 : i32
    %c0_i32_1 = arith.constant 0 : i32
    return %c0_i32, %c0_i32_0 : i32, i32
  }
  func.func @transform_4(%arg0: i32) -> (i32, i32) {
    %c0_i32 = arith.constant 0 : i32
    %c0_i32_0 = arith.constant 0 : i32
    %c0_i32_1 = arith.constant 0 : i32
    return %c0_i32, %c0_i32_0 : i32, i32
  }
  func.func @transform_5(%arg0: i32) -> (i32, i32) {
    %c0_i32 = arith.constant 0 : i32
    %c0_i32_0 = arith.constant 0 : i32
    return %arg0, %c0_i32 : i32, i32
  }
}

</mosaic_0001>

<llo_original>
// kernel: dlpcnn_loss.1
$region0: #{dlpcnn_loss.1}
  #allocation0 [shape = 'u32[]', space=smem, size = 0x4, offset = 0x4, fixed_abs, tag = 'smem constant byte address 0x4 - core index']
  #allocation1 [shape = 'u32[144,128]{1,0:T(1,128)}', space=vmem, size = 0x12000, scoped, tag = 'internal scratch']
  %s0 = inlined_call_operand.vmem [shape: f32[8,4], index: 0, kind: input, shape index: {}]
  %s1 = inlined_call_operand.vmem [shape: s32[8,1], index: 1, kind: input, shape index: {}]
  %s2 = inlined_call_operand.vmem [shape: f32[8,128], index: 2, kind: input, shape index: {}]
  %s3 = inlined_call_operand.vmem [shape: s32[1,8], index: 3, kind: input, shape index: {}]
  %s4 = inlined_call_operand.vmem [shape: f32[1,8], index: 4, kind: input, shape index: {}]
  %s5 = inlined_call_operand.vmem [shape: f32[8,128], index: 5, kind: output, shape index: {}]
  %s6 = sld [smem:[#allocation0]]
  $region30: #{dlpcnn_loss.1} parent=0
    _
  %s8 = ssub.s32 1, %s6
  %s9 = scalar_select 0, %s8, %s6
  // Predicated region
  $region2: #{dlpcnn_loss.1} parent=0 // pred_check
    _
  $region3: #{dlpcnn_loss.1} parent=0 // pred_check_branch
    %11 = sbr.rel (0) target = $region5
  $region4: #{dlpcnn_loss.1} parent=0 // pred_region
    _
  $region5: #{dlpcnn_loss.1} parent=0 // pred_fallthru
    _
  // Predicated region
  $region6: #{dlpcnn_loss.1} parent=0 // pred_check
    _
  $region7: #{dlpcnn_loss.1} parent=0 // pred_check_branch
    %13 = sbr.rel (0) target = $region9
  $region8: #{dlpcnn_loss.1} parent=0 // pred_region
    _
  $region9: #{dlpcnn_loss.1} parent=0 // pred_fallthru
    _
  // Predicated region
  $region10: #{dlpcnn_loss.1} parent=0 // pred_check
    _
  $region11: #{dlpcnn_loss.1} parent=0 // pred_check_branch
    %15 = sbr.rel (0) target = $region13
  $region12: #{dlpcnn_loss.1} parent=0 // pred_region
    _
  $region13: #{dlpcnn_loss.1} parent=0 // pred_fallthru
    _
  // Predicated region
  $region14: #{dlpcnn_loss.1} parent=0 // pred_check
    _
  $region15: #{dlpcnn_loss.1} parent=0 // pred_check_branch
    %17 = sbr.rel (0) target = $region17
  $region16: #{dlpcnn_loss.1} parent=0 // pred_region
    _
  $region17: #{dlpcnn_loss.1} parent=0 // pred_fallthru
    _
  // Predicated region
  $region18: #{dlpcnn_loss.1} parent=0 // pred_check
    _
  $region19: #{dlpcnn_loss.1} parent=0 // pred_check_branch
    %19 = sbr.rel (0) target = $region21
  $region20: #{dlpcnn_loss.1} parent=0 // pred_region
    _
  $region21: #{dlpcnn_loss.1} parent=0 // pred_fallthru
    _
  %v20 = vld [vmem:[%s0] sm:$0xff]
  %v21 = vld [vmem:[%s1] sm:$0xff]
  %v22 = vld [vmem:[%s2] sm:$0xff]
  %v23 = vld [vmem:[%s3] sm:$0x1]
  %v24 = vld [vmem:[%s4] sm:$0x1]
  %s25 = smul.u32 0, 8
  %s26 = scalar_lea.vmem %s2, %s25
  %v27 = vld [vmem:[%s26] sm:$0xff]
  %28 = vmatprep.subr.mxu0 0.0
  %29 = vmatpush1.xpose.msra.mxu0 %v22
  %30 = vmatprep.subr.mxu0 0.0
  %31 = vmatpush1.xpose.msra.mxu0 0.0
  %32 = vmatprep.subr.mxu0 0.0
  %33 = vmatpush1.xpose.msra.mxu0 0.0
  %34 = vmatprep.subr.mxu0 0.0
  %35 = vmatpush1.xpose.msra.mxu0 0.0
  %36 = vmatprep.subr.mxu0 0.0
  %37 = vmatpush1.xpose.msra.mxu0 0.0
  %38 = vmatprep.subr.mxu0 0.0
  %39 = vmatpush1.xpose.msra.mxu0 0.0
  %40 = vmatprep.subr.mxu0 0.0
  %41 = vmatpush1.xpose.msra.mxu0 0.0
  %42 = vmatprep.subr.mxu0 0.0
  %43 = vmatpush1.xpose.msra.mxu0 0.0
  %44 = vmatprep.subr.mxu0 0.0
  %45 = vmatpush1.xpose.msra.mxu0 0.0
  %46 = vmatprep.subr.mxu0 0.0
  %47 = vmatpush1.xpose.msra.mxu0 0.0
  %48 = vmatprep.subr.mxu0 0.0
  %49 = vmatpush1.xpose.msra.mxu0 0.0
  %50 = vmatprep.subr.mxu0 0.0
  %51 = vmatpush1.xpose.msra.mxu0 0.0
  %52 = vmatprep.subr.mxu0 0.0
  %53 = vmatpush1.xpose.msra.mxu0 0.0
  %54 = vmatprep.subr.mxu0 0.0
  %55 = vmatpush1.xpose.msra.mxu0 0.0
  %56 = vmatprep.subr.mxu0 0.0
  %57 = vmatpush1.xpose.msra.mxu0 0.0
  %58 = vmatprep.subr.mxu0 0.0
  %59 = vmatpush1.xpose.msra.mxu0 0.0
  %60 = vmatprep.subr.mxu0 0.0
  %61 = vmatpush1.xpose.msra.mxu0 0.0
  %62 = vmatprep.subr.mxu0 0.0
  %63 = vmatpush1.xpose.msra.mxu0 0.0
  %64 = vmatprep.subr.mxu0 0.0
  %65 = vmatpush1.xpose.msra.mxu0 0.0
  %66 = vmatprep.subr.mxu0 0.0
  %67 = vmatpush1.xpose.msra.mxu0 0.0
  %68 = vmatprep.subr.mxu0 0.0
  %69 = vmatpush1.xpose.msra.mxu0 0.0
  %70 = vmatprep.subr.mxu0 0.0
  %71 = vmatpush1.xpose.msra.mxu0 0.0
  %72 = vmatprep.subr.mxu0 0.0
  %73 = vmatpush1.xpose.msra.mxu0 0.0
  %74 = vmatprep.subr.mxu0 0.0
  %75 = vmatpush1.xpose.msra.mxu0 0.0
  %76 = vmatprep.subr.mxu0 0.0
  %77 = vmatpush1.xpose.msra.mxu0 0.0
  %78 = vmatprep.subr.mxu0 0.0
  %79 = vmatpush1.xpose.msra.mxu0 0.0
  %80 = vmatprep.subr.mxu0 0.0
  %81 = vmatpush1.xpose.msra.mxu0 0.0
  %82 = vmatprep.subr.mxu0 0.0
  %83 = vmatpush1.xpose.msra.mxu0 0.0
  %84 = vmatprep.subr.mxu0 0.0
  %85 = vmatpush1.xpose.msra.mxu0 0.0
  %86 = vmatprep.subr.mxu0 0.0
  %87 = vmatpush1.xpose.msra.mxu0 0.0
  %88 = vmatprep.subr.mxu0 0.0
  %89 = vmatpush1.xpose.msra.mxu0 0.0
  %90 = vmatprep.subr.mxu0 0.0
  %91 = vmatpush1.xpose.msra.mxu0 0.0
  %92 = vmatprep.mubr.f32.mxu0 0.0
  %93 = vmatmul.mubr.f32.gmra.mrb[0].mxu0 %v27
  %v94 = vpop.f32.mrb[0].mxu0
  %v95 = vadd.f32 0.0, %v94
  %v96 = vpop.f32.mrb[0].mxu0
  %97 = vdwg.mxu0
  %v98 = vmul.f32 %v27, %v27
  %99 = vadd.xlane.f32.xlu0 %v98
  %v100 = vpop.xlane.xlu0 %99
  %v102 = vlaneseq
  %v103 = vshrl.u32 %v102, 7
  %v104 = vsub.s32 0, %v103
  %v105 = vrot.slane %v24, %v104
  %v107 = vadd.f32 %v100, %v105
  %v108 = vmul.f32 %v95, 2.0
  %v109 = vsub.f32 %v107, %v108
  %v110 = vmax.f32 %v109, 0.0
  %v111 = vlaneseq
  %v112 = vand.u32 %v111, 127
  %v113 = vlaneseq
  %v114 = vshrl.u32 %v113, 7
  %v115 = vstv %s25
  %v116 = vadd.s32 %v114, %v115
  %117 = vset.pattern.permute.xlu0 0
  %118 = vperm.xlu0 %117, %v21
  %v119 = vpop.permute.xlu0 %118
  %v120 = vlaneseq
  %v121 = vshrl.u32 %v120, 7
  %v122 = vsub.s32 0, %v121
  %v123 = vrot.slane %v23, %v122
  %vm124 = vcmp.eq.s32.totalorder %v119, %v123
  %vm125 = vcmp.ne.s32.totalorder %v112, %v116
  %vm126 = vmand %vm124, %vm125
  %v128 = vand.u32 %v110, 4294967288
  %v129 = vor.u32 %v128, %v112
  %v130 = vsel %vm126, %v129, 2147483647
  %vm131 = vcmask 64512
  %v132 = vsel %vm131, %v130, 2147483647
  %v133 = vand.u32 %v132, 65535
  %v134 = vshra.s32 %v132, 16
  %v135 = vcvt.s32.f32 %v133
  %v136 = vcvt.s32.f32 %v134
  %137 = vmin.xlane.f32.xlu0 %v136
  %v138 = vpop.xlane.xlu0 %137
  %vm139 = vcmp.eq.f32.partialorder %v136, %v138
  %v140 = vsel %vm139, %v135, inf
  %141 = vmin.xlane.f32.xlu0 %v140
  %v142 = vpop.xlane.xlu0 %141
  %v143 = vcvt.f32.s32 %v142
  %v144 = vcvt.f32.s32 %v138
  %v145 = vshll.u32 %v144, 16
  %v146 = vadd.s32 %v145, %v143
  %vm147 = vcmp.eq.s32.totalorder %v130, %v146
  %v148 = vsel %vm147, 2147483647, %v130
  %v149 = vsel %vm131, %v148, 2147483647
  %v150 = vand.u32 %v149, 65535
  %v151 = vshra.s32 %v149, 16
  %v152 = vcvt.s32.f32 %v150
  %v153 = vcvt.s32.f32 %v151
  %154 = vmin.xlane.f32.xlu0 %v153
  %v155 = vpop.xlane.xlu0 %154
  %vm156 = vcmp.eq.f32.partialorder %v153, %v155
  %v157 = vsel %vm156, %v152, inf
  %158 = vmin.xlane.f32.xlu0 %v157
  %v159 = vpop.xlane.xlu0 %158
  %v160 = vcvt.f32.s32 %v159
  %v161 = vcvt.f32.s32 %v155
  %v162 = vshll.u32 %v161, 16
  %v163 = vadd.s32 %v162, %v160
  %vm164 = vcmp.eq.s32.totalorder %v148, %v163
  %v165 = vsel %vm164, 2147483647, %v148
  %v166 = vsel %vm131, %v165, 2147483647
  %v167 = vand.u32 %v166, 65535
  %v168 = vshra.s32 %v166, 16
  %v169 = vcvt.s32.f32 %v167
  %v170 = vcvt.s32.f32 %v168
  %171 = vmin.xlane.f32.xlu0 %v170
  %v172 = vpop.xlane.xlu0 %171
  %vm173 = vcmp.eq.f32.partialorder %v170, %v172
  %v174 = vsel %vm173, %v169, inf
  %175 = vmin.xlane.f32.xlu0 %v174
  %v176 = vpop.xlane.xlu0 %175
  %v177 = vcvt.f32.s32 %v176
  %v178 = vcvt.f32.s32 %v172
  %v179 = vshll.u32 %v178, 16
  %v180 = vadd.s32 %v179, %v177
  %vm181 = vcmp.eq.s32.totalorder %v165, %v180
  %v182 = vsel %vm181, 2147483647, %v165
  %v183 = vsel %vm131, %v182, 2147483647
  %v184 = vand.u32 %v183, 65535
  %v185 = vshra.s32 %v183, 16
  %v186 = vcvt.s32.f32 %v184
  %v187 = vcvt.s32.f32 %v185
  %188 = vmin.xlane.f32.xlu0 %v187
  %v189 = vpop.xlane.xlu0 %188
  %vm190 = vcmp.eq.f32.partialorder %v187, %v189
  %v191 = vsel %vm190, %v186, inf
  %192 = vmin.xlane.f32.xlu0 %v191
  %v193 = vpop.xlane.xlu0 %192
  %v194 = vcvt.f32.s32 %v193
  %v195 = vcvt.f32.s32 %v189
  %v196 = vshll.u32 %v195, 16
  %v197 = vadd.s32 %v196, %v194
  %vm198 = vcmp.eq.s32.totalorder %v182, %v197
  %v199 = vsel %vm198, 2147483647, %v182
  %v200 = vsel %vm131, %v199, 2147483647
  %v201 = vand.u32 %v200, 65535
  %v202 = vshra.s32 %v200, 16
  %v203 = vcvt.s32.f32 %v201
  %v204 = vcvt.s32.f32 %v202
  %205 = vmin.xlane.f32.xlu0 %v204
  %v206 = vpop.xlane.xlu0 %205
  %vm207 = vcmp.eq.f32.partialorder %v204, %v206
  %v208 = vsel %vm207, %v203, inf
  %209 = vmin.xlane.f32.xlu0 %v208
  %v210 = vpop.xlane.xlu0 %209
  %v211 = vcvt.f32.s32 %v210
  %v212 = vcvt.f32.s32 %v206
  %v213 = vshll.u32 %v212, 16
  %v214 = vadd.s32 %v213, %v211
  %vm215 = vcmp.eq.s32.totalorder %v199, %v214
  %v216 = vsel %vm215, 2147483647, %v199
  %v217 = vsel %vm131, %v216, 2147483647
  %v218 = vand.u32 %v217, 65535
  %v219 = vshra.s32 %v217, 16
  %v220 = vcvt.s32.f32 %v218
  %v221 = vcvt.s32.f32 %v219
  %222 = vmin.xlane.f32.xlu0 %v221
  %v223 = vpop.xlane.xlu0 %222
  %vm224 = vcmp.eq.f32.partialorder %v221, %v223
  %v225 = vsel %vm224, %v220, inf
  %226 = vmin.xlane.f32.xlu0 %v225
  %v227 = vpop.xlane.xlu0 %226
  %v228 = vcvt.f32.s32 %v227
  %v229 = vcvt.f32.s32 %v223
  %v230 = vshll.u32 %v229, 16
  %v231 = vadd.s32 %v230, %v228
  %vm232 = vcmp.eq.s32.totalorder %v216, %v231
  %v233 = vsel %vm232, 2147483647, %v216
  %v234 = vsel %vm131, %v233, 2147483647
  %v235 = vand.u32 %v234, 65535
  %v236 = vshra.s32 %v234, 16
  %v237 = vcvt.s32.f32 %v235
  %v238 = vcvt.s32.f32 %v236
  %239 = vmin.xlane.f32.xlu0 %v238
  %v240 = vpop.xlane.xlu0 %239
  %vm241 = vcmp.eq.f32.partialorder %v238, %v240
  %v242 = vsel %vm241, %v237, inf
  %243 = vmin.xlane.f32.xlu0 %v242
  %v244 = vpop.xlane.xlu0 %243
  %v245 = vcvt.f32.s32 %v244
  %v246 = vcvt.f32.s32 %v240
  %v247 = vshll.u32 %v246, 16
  %v248 = vadd.s32 %v247, %v245
  %vm249 = vcmp.eq.s32.totalorder %v233, %v248
  %v250 = vsel %vm249, 2147483647, %v233
  %v251 = vsel %vm131, %v250, 2147483647
  %v252 = vand.u32 %v251, 65535
  %v253 = vshra.s32 %v251, 16
  %v254 = vcvt.s32.f32 %v252
  %v255 = vcvt.s32.f32 %v253
  %256 = vmin.xlane.f32.xlu0 %v255
  %v257 = vpop.xlane.xlu0 %256
  %vm258 = vcmp.eq.f32.partialorder %v255, %v257
  %v259 = vsel %vm258, %v254, inf
  %260 = vmin.xlane.f32.xlu0 %v259
  %v261 = vpop.xlane.xlu0 %260
  %v262 = vcvt.f32.s32 %v261
  %v263 = vcvt.f32.s32 %v257
  %v264 = vshll.u32 %v263, 16
  %v265 = vadd.s32 %v264, %v262
  %vm266 = vcmp.eq.s32.totalorder %v250, %v265
  %v267 = vsel %vm266, 2147483647, %v250
  %v268 = vsel %vm131, %v267, 2147483647
  %v269 = vand.u32 %v268, 65535
  %v270 = vshra.s32 %v268, 16
  %v271 = vcvt.s32.f32 %v269
  %v272 = vcvt.s32.f32 %v270
  %273 = vmin.xlane.f32.xlu0 %v272
  %v274 = vpop.xlane.xlu0 %273
  %vm275 = vcmp.eq.f32.partialorder %v272, %v274
  %v276 = vsel %vm275, %v271, inf
  %277 = vmin.xlane.f32.xlu0 %v276
  %v278 = vpop.xlane.xlu0 %277
  %v279 = vcvt.f32.s32 %v278
  %v280 = vcvt.f32.s32 %v274
  %v281 = vshll.u32 %v280, 16
  %v282 = vadd.s32 %v281, %v279
  %vm283 = vcmp.eq.s32.totalorder %v267, %v282
  %v284 = vsel %vm283, 2147483647, %v267
  %v285 = vsel %vm131, %v284, 2147483647
  %v286 = vand.u32 %v285, 65535
  %v287 = vshra.s32 %v285, 16
  %v288 = vcvt.s32.f32 %v286
  %v289 = vcvt.s32.f32 %v287
  %290 = vmin.xlane.f32.xlu0 %v289
  %v291 = vpop.xlane.xlu0 %290
  %vm292 = vcmp.eq.f32.partialorder %v289, %v291
  %v293 = vsel %vm292, %v288, inf
  %294 = vmin.xlane.f32.xlu0 %v293
  %v295 = vpop.xlane.xlu0 %294
  %v296 = vcvt.f32.s32 %v295
  %v297 = vcvt.f32.s32 %v291
  %v298 = vshll.u32 %v297, 16
  %v299 = vadd.s32 %v298, %v296
  %vm300 = vcmp.eq.s32.totalorder %v284, %v299
  %v301 = vsel %vm300, 2147483647, %v284
  %v302 = vsel %vm131, %v301, 2147483647
  %v303 = vand.u32 %v302, 65535
  %v304 = vshra.s32 %v302, 16
  %v305 = vcvt.s32.f32 %v303
  %v306 = vcvt.s32.f32 %v304
  %307 = vmin.xlane.f32.xlu0 %v306
  %v308 = vpop.xlane.xlu0 %307
  %vm309 = vcmp.eq.f32.partialorder %v306, %v308
  %v310 = vsel %vm309, %v305, inf
  %311 = vmin.xlane.f32.xlu0 %v310
  %v312 = vpop.xlane.xlu0 %311
  %v313 = vcvt.f32.s32 %v312
  %v314 = vcvt.f32.s32 %v308
  %v315 = vshll.u32 %v314, 16
  %v316 = vadd.s32 %v315, %v313
  %vm317 = vcmp.eq.s32.totalorder %v301, %v316
  %v318 = vsel %vm317, 2147483647, %v301
  %v319 = vsel %vm131, %v318, 2147483647
  %v320 = vand.u32 %v319, 65535
  %v321 = vshra.s32 %v319, 16
  %v322 = vcvt.s32.f32 %v320
  %v323 = vcvt.s32.f32 %v321
  %324 = vmin.xlane.f32.xlu0 %v323
  %v325 = vpop.xlane.xlu0 %324
  %vm326 = vcmp.eq.f32.partialorder %v323, %v325
  %v327 = vsel %vm326, %v322, inf
  %328 = vmin.xlane.f32.xlu0 %v327
  %v329 = vpop.xlane.xlu0 %328
  %v330 = vcvt.f32.s32 %v329
  %v331 = vcvt.f32.s32 %v325
  %v332 = vshll.u32 %v331, 16
  %v333 = vadd.s32 %v332, %v330
  %vm334 = vcmp.eq.s32.totalorder %v318, %v333
  %v335 = vsel %vm334, 2147483647, %v318
  %v336 = vsel %vm131, %v335, 2147483647
  %v337 = vand.u32 %v336, 65535
  %v338 = vshra.s32 %v336, 16
  %v339 = vcvt.s32.f32 %v337
  %v340 = vcvt.s32.f32 %v338
  %341 = vmin.xlane.f32.xlu0 %v340
  %v342 = vpop.xlane.xlu0 %341
  %vm343 = vcmp.eq.f32.partialorder %v340, %v342
  %v344 = vsel %vm343, %v339, inf
  %345 = vmin.xlane.f32.xlu0 %v344
  %v346 = vpop.xlane.xlu0 %345
  %v347 = vcvt.f32.s32 %v346
  %v348 = vcvt.f32.s32 %v342
  %v349 = vshll.u32 %v348, 16
  %v350 = vadd.s32 %v349, %v347
  %vm351 = vcmp.eq.s32.totalorder %v335, %v350
  %v352 = vsel %vm351, 2147483647, %v335
  %v353 = vsel %vm131, %v352, 2147483647
  %v354 = vand.u32 %v353, 65535
  %v355 = vshra.s32 %v353, 16
  %v356 = vcvt.s32.f32 %v354
  %v357 = vcvt.s32.f32 %v355
  %358 = vmin.xlane.f32.xlu0 %v357
  %v359 = vpop.xlane.xlu0 %358
  %vm360 = vcmp.eq.f32.partialorder %v357, %v359
  %v361 = vsel %vm360, %v356, inf
  %362 = vmin.xlane.f32.xlu0 %v361
  %v363 = vpop.xlane.xlu0 %362
  %v364 = vcvt.f32.s32 %v363
  %v365 = vcvt.f32.s32 %v359
  %v366 = vshll.u32 %v365, 16
  %v367 = vadd.s32 %v366, %v364
  %vm368 = vcmp.eq.s32.totalorder %v352, %v367
  %v369 = vsel %vm368, 2147483647, %v352
  %v370 = vsel %vm131, %v369, 2147483647
  %v371 = vand.u32 %v370, 65535
  %v372 = vshra.s32 %v370, 16
  %v373 = vcvt.s32.f32 %v371
  %v374 = vcvt.s32.f32 %v372
  %375 = vmin.xlane.f32.xlu0 %v374
  %v376 = vpop.xlane.xlu0 %375
  %vm377 = vcmp.eq.f32.partialorder %v374, %v376
  %v378 = vsel %vm377, %v373, inf
  %379 = vmin.xlane.f32.xlu0 %v378
  %v380 = vpop.xlane.xlu0 %379
  %v381 = vcvt.f32.s32 %v380
  %v382 = vcvt.f32.s32 %v376
  %v383 = vshll.u32 %v382, 16
  %v384 = vadd.s32 %v383, %v381
  %vm385 = vcmp.eq.s32.totalorder %v369, %v384
  %v386 = vsel %vm385, 2147483647, %v369
  %v387 = vsel %vm131, %v386, 2147483647
  %v388 = vand.u32 %v387, 65535
  %v389 = vshra.s32 %v387, 16
  %v390 = vcvt.s32.f32 %v388
  %v391 = vcvt.s32.f32 %v389
  %392 = vmin.xlane.f32.xlu0 %v391
  %v393 = vpop.xlane.xlu0 %392
  %vm394 = vcmp.eq.f32.partialorder %v391, %v393
  %v395 = vsel %vm394, %v390, inf
  %396 = vmin.xlane.f32.xlu0 %v395
  %v397 = vpop.xlane.xlu0 %396
  %v398 = vcvt.f32.s32 %v397
  %v399 = vcvt.f32.s32 %v393
  %v400 = vshll.u32 %v399, 16
  %v401 = vadd.s32 %v400, %v398
  %vm402 = vcmp.eq.s32.totalorder %v386, %v401
  %v403 = vsel %vm402, 2147483647, %v386
  %v404 = vsel %vm131, %v403, 2147483647
  %v405 = vand.u32 %v404, 65535
  %v406 = vshra.s32 %v404, 16
  %v407 = vcvt.s32.f32 %v405
  %v408 = vcvt.s32.f32 %v406
  %409 = vmin.xlane.f32.xlu0 %v408
  %v410 = vpop.xlane.xlu0 %409
  %vm411 = vcmp.eq.f32.partialorder %v408, %v410
  %v412 = vsel %vm411, %v407, inf
  %413 = vmin.xlane.f32.xlu0 %v412
  %v414 = vpop.xlane.xlu0 %413
  %v415 = vcvt.f32.s32 %v414
  %v416 = vcvt.f32.s32 %v410
  %v417 = vshll.u32 %v416, 16
  %v418 = vadd.s32 %v417, %v415
  %vm419 = vcmp.eq.s32.totalorder %v403, %v418
  %v420 = vsel %vm419, 2147483647, %v403
  %v421 = vsel %vm131, %v420, 2147483647
  %v422 = vand.u32 %v421, 65535
  %v423 = vshra.s32 %v421, 16
  %v424 = vcvt.s32.f32 %v422
  %v425 = vcvt.s32.f32 %v423
  %426 = vmin.xlane.f32.xlu0 %v425
  %v427 = vpop.xlane.xlu0 %426
  %vm428 = vcmp.eq.f32.partialorder %v425, %v427
  %v429 = vsel %vm428, %v424, inf
  %430 = vmin.xlane.f32.xlu0 %v429
  %v431 = vpop.xlane.xlu0 %430
  %v432 = vcvt.f32.s32 %v431
  %v433 = vcvt.f32.s32 %v427
  %v434 = vshll.u32 %v433, 16
  %v435 = vadd.s32 %v434, %v432
  %vm436 = vcmp.eq.s32.totalorder %v420, %v435
  %v437 = vsel %vm436, 2147483647, %v420
  %v438 = vsel %vm131, %v437, 2147483647
  %v439 = vand.u32 %v438, 65535
  %v440 = vshra.s32 %v438, 16
  %v441 = vcvt.s32.f32 %v439
  %v442 = vcvt.s32.f32 %v440
  %443 = vmin.xlane.f32.xlu0 %v442
  %v444 = vpop.xlane.xlu0 %443
  %vm445 = vcmp.eq.f32.partialorder %v442, %v444
  %v446 = vsel %vm445, %v441, inf
  %447 = vmin.xlane.f32.xlu0 %v446
  %v448 = vpop.xlane.xlu0 %447
  %v449 = vcvt.f32.s32 %v448
  %v450 = vcvt.f32.s32 %v444
  %v451 = vshll.u32 %v450, 16
  %v452 = vadd.s32 %v451, %v449
  %vm453 = vcmp.eq.s32.totalorder %v437, %v452
  %v454 = vsel %vm453, 2147483647, %v437
  %v455 = vsel %vm131, %v454, 2147483647
  %v456 = vand.u32 %v455, 65535
  %v457 = vshra.s32 %v455, 16
  %v458 = vcvt.s32.f32 %v456
  %v459 = vcvt.s32.f32 %v457
  %460 = vmin.xlane.f32.xlu0 %v459
  %v461 = vpop.xlane.xlu0 %460
  %vm462 = vcmp.eq.f32.partialorder %v459, %v461
  %v463 = vsel %vm462, %v458, inf
  %464 = vmin.xlane.f32.xlu0 %v463
  %v465 = vpop.xlane.xlu0 %464
  %v466 = vcvt.f32.s32 %v465
  %v467 = vcvt.f32.s32 %v461
  %v468 = vshll.u32 %v467, 16
  %v469 = vadd.s32 %v468, %v466
  %vm470 = vcmp.eq.s32.totalorder %v454, %v469
  %v471 = vsel %vm470, 2147483647, %v454
  %vm472 = vcmp.eq.s32.totalorder %v471, 2147483647
  %vm473 = vcmp.ne.s32.totalorder %v130, 2147483647
  %vm474 = vmand %vm472, %vm473
  %v475 = vsel %vm474, 1.0, 0.0
  %v477 = vsel %vm131, %v475, 0
  %479 = vmatprep.subr.mxu0 0.0
  %480 = vmatpush1.msra.mxu0 %v22
  %481 = vmatprep.subr.mxu0 0.0
  %482 = vmatpush1.msra.mxu0 0.0
  %483 = vmatprep.subr.mxu0 0.0
  %484 = vmatpush1.msra.mxu0 0.0
  %485 = vmatprep.subr.mxu0 0.0
  %486 = vmatpush1.msra.mxu0 0.0
  %487 = vmatprep.subr.mxu0 0.0
  %488 = vmatpush1.msra.mxu0 0.0
  %489 = vmatprep.subr.mxu0 0.0
  %490 = vmatpush1.msra.mxu0 0.0
  %491 = vmatprep.subr.mxu0 0.0
  %492 = vmatpush1.msra.mxu0 0.0
  %493 = vmatprep.subr.mxu0 0.0
  %494 = vmatpush1.msra.mxu0 0.0
  %495 = vmatprep.subr.mxu0 0.0
  %496 = vmatpush1.msra.mxu0 0.0
  %497 = vmatprep.subr.mxu0 0.0
  %498 = vmatpush1.msra.mxu0 0.0
  %499 = vmatprep.subr.mxu0 0.0
  %500 = vmatpush1.msra.mxu0 0.0
  %501 = vmatprep.subr.mxu0 0.0
  %502 = vmatpush1.msra.mxu0 0.0
  %503 = vmatprep.subr.mxu0 0.0
  %504 = vmatpush1.msra.mxu0 0.0
  %505 = vmatprep.subr.mxu0 0.0
  %506 = vmatpush1.msra.mxu0 0.0
  %507 = vmatprep.subr.mxu0 0.0
  %508 = vmatpush1.msra.mxu0 0.0
  %509 = vmatprep.subr.mxu0 0.0
  %510 = vmatpush1.msra.mxu0 0.0
  %511 = vmatprep.subr.mxu0 0.0
  %512 = vmatpush1.msra.mxu0 0.0
  %513 = vmatprep.subr.mxu0 0.0
  %514 = vmatpush1.msra.mxu0 0.0
  %515 = vmatprep.subr.mxu0 0.0
  %516 = vmatpush1.msra.mxu0 0.0
  %517 = vmatprep.subr.mxu0 0.0
  %518 = vmatpush1.msra.mxu0 0.0
  %519 = vmatprep.subr.mxu0 0.0
  %520 = vmatpush1.msra.mxu0 0.0
  %521 = vmatprep.subr.mxu0 0.0
  %522 = vmatpush1.msra.mxu0 0.0
  %523 = vmatprep.subr.mxu0 0.0
  %524 = vmatpush1.msra.mxu0 0.0
  %525 = vmatprep.subr.mxu0 0.0
  %526 = vmatpush1.msra.mxu0 0.0
  %527 = vmatprep.subr.mxu0 0.0
  %528 = vmatpush1.msra.mxu0 0.0
  %529 = vmatprep.subr.mxu0 0.0
  %530 = vmatpush1.msra.mxu0 0.0
  %531 = vmatprep.subr.mxu0 0.0
  %532 = vmatpush1.msra.mxu0 0.0
  %533 = vmatprep.subr.mxu0 0.0
  %534 = vmatpush1.msra.mxu0 0.0
  %535 = vmatprep.subr.mxu0 0.0
  %536 = vmatpush1.msra.mxu0 0.0
  %537 = vmatprep.subr.mxu0 0.0
  %538 = vmatpush1.msra.mxu0 0.0
  %539 = vmatprep.subr.mxu0 0.0
  %540 = vmatpush1.msra.mxu0 0.0
  %541 = vmatprep.subr.mxu0 0.0
  %542 = vmatpush1.msra.mxu0 0.0
  %543 = vmatprep.mubr.f32.mxu0 0.0
  %544 = vmatmul.mubr.f32.gmra.mrb[0].mxu0 %v477
  %v545 = vpop.f32.mrb[0].mxu0
  %v546 = vadd.f32 0.0, %v545
  %v547 = vpop.f32.mrb[0].mxu0
  %548 = vdwg.mxu0
  %v549 = vmul.f32 %v546, 0.05
  %v550 = vsub.f32 %v27, %v549
  %v551 = vmul.f32 %v550, %v550
  %552 = vadd.xlane.f32.xlu0 %v551
  %v553 = vpop.xlane.xlu0 %552
  %vm554 = vcmp.eq.s32.totalorder %v112, %v119
  %v555 = vsel %vm554, %v20, 0.0
  %vm556 = vcmask 31744
  %v557 = vsel %vm556, %v555, 0.0
  %558 = vadd.xlane.f32.xlu0 %v557
  %v559 = vpop.xlane.xlu0 %558
  %v560 = vsel %vm556, %v20, -inf
  %561 = vmax.xlane.f32.xlu0 %v560
  %v562 = vpop.xlane.xlu0 %561
  %v563 = vsub.f32 %v20, %v562
  %v564 = vmul.f32 %v563, 1.442695
  %v565 = vpow.pop %v564
  %v566 = vsel %vm556, %v565, 0.0
  %567 = vadd.xlane.f32.xlu0 %v566
  %v568 = vpop.xlane.xlu0 %567
  %v569 = vlog2.pop %v568
  %v570 = vmul.f32 %v569, 0.6931472
  %v571 = vadd.f32 %v562, %v570
  %vm572 = vcmp.lt.s32.totalorder %v116, 8
  %v573 = vmul.f32 %v553, 0.0015
  %v574 = vsub.f32 %v571, %v559
  %v575 = vadd.f32 %v573, %v574
  %v576 = vsel %vm572, %v575, 0.0
  %vm577 = vcmask 7168
  %v578 = vsel %vm577, %v576, 0.0
  %579 = vadd.xlane.f32.xlu0 %v578
  %v580 = vpop.xlane.xlu0 %579
  %v581 = vrot.slane %v580, 4
  %v582 = vadd.f32 %v580, %v581
  %v583 = vrot.slane %v582, 2
  %v584 = vadd.f32 %v582, %v583
  %v585 = vrot.slane %v584, 1
  %v586 = vadd.f32 %v584, %v585
  %s587 = vtos %v586
  %s588 = smul.f32 %s587, 0.125
  %vm589 = vcmp.eq.s32.totalorder %v114, 0
  %vm590 = vcmp.eq.s32.totalorder %v112, 0
  %vm591 = vmand %vm589, %vm590
  %v592 = vstv %s588
  %v593 = vsel %vm591, %v592, 0.0
  %594 = vst [vmem:[%s5] sm:$0xff] %v593
  // Predicated region
  $region22: #{dlpcnn_loss.1} parent=0 // pred_check
    _
  $region23: #{dlpcnn_loss.1} parent=0 // pred_check_branch
    %596 = sbr.rel (0) target = $region25
  $region24: #{dlpcnn_loss.1} parent=0 // pred_region
    _
  $region25: #{dlpcnn_loss.1} parent=0 // pred_fallthru
    _
  // Predicated region
  $region26: #{dlpcnn_loss.1} parent=0 // pred_check
    _
  $region27: #{dlpcnn_loss.1} parent=0 // pred_check_branch
    %598 = sbr.rel (0) target = $region29
  $region28: #{dlpcnn_loss.1} parent=0 // pred_region
    _
  $region29: #{dlpcnn_loss.1} parent=0 // pred_fallthru
    _

</llo_original>
